<compile_context>
chip_gen: v7x
topology: tpu7x:2x2x1
jax: 0.10.0
libtpu: 0.0.40
codegen_flags: <defaults>
</compile_context>

<pallas_src>
import jax
import jax.numpy as jnp
from jax.experimental import pallas as pl
from jax.experimental.pallas import tpu as pltpu

_MEAN = (0.485, 0.456, 0.406)
_INV_STD = (1.0 / 0.229, 1.0 / 0.224, 1.0 / 0.225)


def _preprocess_kernel(x_ref, o_ref):
    # x_ref / o_ref: (3, TR, L) tile for one (n, row_tile) grid point.
    # Output channel c reads input channel 2 - c (the PyTorch flip), then the
    # mean/inv_std for the *output* channel are applied as scalar constants.
    for c in range(3):
        x = x_ref[2 - c].astype(jnp.float32)
        o_ref[c] = ((x - _MEAN[c]) * _INV_STD[c]).astype(o_ref.dtype)


def _choose_layout(h: int, w: int):
    """Factor the spatial extent into (rows, lanes).

    Preferred: flatten H*W and pick lanes as a multiple of 128 (lane-dense,
    unmasked stores).  Fallback for hw % 128 != 0: keep (H, W) with the full W
    as the lane dim (allowed by the full-dim rule) so sublane density and row
    pipelining are preserved.
    """
    hw = h * w
    if hw % 128 == 0:
        for lanes in (1024, 512, 256, 128):
            if hw % lanes == 0:
                return hw // lanes, lanes
    return h, w


def _choose_row_tile(rows: int, lanes: int, itemsize: int, target_bytes: int):
    """Row tile targeting `target_bytes` per (3, TR, lanes) block.

    Uses a dtype-aware sublane pack and prefers a tile that divides `rows`
    evenly (avoids a masked partial last tile on the store path).
    """
    pack = 8 * max(1, 4 // itemsize)          # 8 f32 / 16 bf16 / 32 int8|fp8
    row_bytes = 3 * lanes * itemsize          # bytes per spatial row across C
    if rows <= pack or rows * row_bytes <= target_bytes:
        return rows                           # full extent (small / fits)
    tr = max(pack, (target_bytes // row_bytes) // pack * pack)
    tr = min(tr, rows)
    if rows % pack == 0:
        t = tr
        floor = max(pack, tr // 2)
        while t >= floor:
            if rows % t == 0:                 # even division: no masked tail
                return t
            t -= pack
    return tr                                 # cdiv; Pallas masks last tile


def _vmem_config():
    """(vmem_limit_bytes, target block bytes), generation-aware."""
    cap = None
    try:
        cap = getattr(pltpu.get_tpu_info(), "vmem_capacity_bytes", None)
    except Exception:
        cap = None
    if cap is not None and cap >= 128 * 1024 * 1024:
        # v5e / v6e: 128 MiB physical VMEM -> roomier limit, bigger blocks.
        return 64 * 1024 * 1024, 6 << 20
    # v7x (64 MiB physical per TC) or unknown: conservative but still large.
    # 4 MiB blocks double-buffered in+out = 16 MiB, inside the 32 MiB limit.
    return 32 * 1024 * 1024, 4 << 20


def preprocess(x):
    """x: (N, 3, H, W) float array. Returns same shape/dtype."""
    N, C, H, W = x.shape
    assert C == 3, "Preprocess expects 3 input channels (RGB)"

    rows, lanes = _choose_layout(H, W)
    itemsize = jnp.dtype(x.dtype).itemsize
    vmem_limit, target_bytes = _vmem_config()
    tr = _choose_row_tile(rows, lanes, itemsize, target_bytes)
    n_row_tiles = -(-rows // tr)  # cdiv

    # NCHW is contiguous over (H, W), so this reshape is free layout plumbing
    # (a no-op in the fallback branch where rows == H, lanes == W).
    x2 = x.reshape(N, C, rows, lanes)

    out = pl.pallas_call(
        _preprocess_kernel,
        out_shape=jax.ShapeDtypeStruct((N, C, rows, lanes), x.dtype),
        grid=(N, n_row_tiles),
        in_specs=[
            pl.BlockSpec((None, C, tr, lanes), lambda n, r: (n, 0, r, 0)),
        ],
        out_specs=pl.BlockSpec((None, C, tr, lanes), lambda n, r: (n, 0, r, 0)),
        compiler_params=pltpu.CompilerParams(
            dimension_semantics=("parallel", "parallel"),
            vmem_limit_bytes=vmem_limit,
        ),
    )(x2)

    return out.reshape(N, C, H, W)


def _reference(x):
    mean = jnp.array(_MEAN, dtype=x.dtype).reshape(1, 3, 1, 1)
    inv_std = jnp.array(_INV_STD, dtype=x.dtype).reshape(1, 3, 1, 1)
    return (x[:, ::-1, :, :] - mean) * inv_std


if __name__ == "__main__":
    key = jax.random.PRNGKey(0)
    k0, k1 = jax.random.split(key)

    # Small shape consistent with the module: batch=2, channels=3 (required),
    # spatial=16x16.  Exercises the lane-dense (rows, 128*k) layout.
    x = jax.random.uniform(k0, (2, 3, 16, 16), dtype=jnp.float32)
    out = jax.block_until_ready(preprocess(x))
    ref = _reference(x)
    assert out.shape == ref.shape and out.dtype == ref.dtype
    assert jnp.allclose(out, ref, atol=1e-6, rtol=1e-6)

    # Exercise the non-128-divisible fallback layout (full-W lane dim).
    x2 = jax.random.uniform(k1, (1, 3, 7, 12), dtype=jnp.float32)
    out2 = jax.block_until_ready(preprocess(x2))
    assert jnp.allclose(out2, _reference(x2), atol=1e-6, rtol=1e-6)

    print("KERNEL_OK")
</pallas_src>

<mosaic_0001>
module attributes {stable_mosaic.version = 11 : i64} {
  func.func @_preprocess_kernel(%arg0: i32, %arg1: i32, %arg2: memref<1x3x1x256xf32, #tpu.memory_space<vmem>>, %arg3: memref<1x3x1x256xf32, #tpu.memory_space<vmem>>) attributes {dimension_semantics = [#tpu.dimension_semantics<parallel>, #tpu.dimension_semantics<parallel>], iteration_bounds = array<i64: 2, 1>, scalar_prefetch = 0 : i64, scratch_operands = 0 : i64, tpu.core_type = #tpu.core_type<tc>, window_params = [{transform_indices = @transform_0, window_bounds = array<i64: 1, 3, 1, 256>}, {transform_indices = @transform_1, window_bounds = array<i64: 1, 3, 1, 256>}]} {
    %c0 = arith.constant 0 : index
    %c2 = arith.constant 2 : index
    %c0_0 = arith.constant 0 : index
    %c0_1 = arith.constant 0 : index
    %0 = vector.load %arg2[%c0, %c2, %c0_0, %c0_1] : memref<1x3x1x256xf32, #tpu.memory_space<vmem>>, vector<1x1x1x256xf32>
    %1 = vector.shape_cast %0 : vector<1x1x1x256xf32> to vector<1x256xf32>
    %cst = arith.constant 4.850000e-01 : f32
    %2 = vector.broadcast %cst : f32 to vector<1x256xf32>
    %3 = arith.subf %1, %2 : vector<1x256xf32>
    %cst_2 = arith.constant 4.36681223 : f32
    %4 = vector.broadcast %cst_2 : f32 to vector<1x256xf32>
    %5 = arith.mulf %3, %4 : vector<1x256xf32>
    %c0_3 = arith.constant 0 : index
    %c0_4 = arith.constant 0 : index
    %c0_5 = arith.constant 0 : index
    %c0_6 = arith.constant 0 : index
    %6 = vector.load %arg3[%c0_3, %c0_4, %c0_5, %c0_6] : memref<1x3x1x256xf32, #tpu.memory_space<vmem>>, vector<1x1x1x256xf32>
    %7 = vector.shape_cast %6 : vector<1x1x1x256xf32> to vector<1x256xf32>
    %8 = vector.shape_cast %5 : vector<1x256xf32> to vector<1x1x1x256xf32>
    tpu.vector_store %arg3[%c0_3, %c0_4, %c0_5, %c0_6], %8 {strides = array<i32>} : memref<1x3x1x256xf32, #tpu.memory_space<vmem>>, vector<1x1x1x256xf32>,
    %c0_7 = arith.constant 0 : index
    %c1 = arith.constant 1 : index
    %c0_8 = arith.constant 0 : index
    %c0_9 = arith.constant 0 : index
    %9 = vector.load %arg2[%c0_7, %c1, %c0_8, %c0_9] : memref<1x3x1x256xf32, #tpu.memory_space<vmem>>, vector<1x1x1x256xf32>
    %10 = vector.shape_cast %9 : vector<1x1x1x256xf32> to vector<1x256xf32>
    %cst_10 = arith.constant 4.560000e-01 : f32
    %11 = vector.broadcast %cst_10 : f32 to vector<1x256xf32>
    %12 = arith.subf %10, %11 : vector<1x256xf32>
    %cst_11 = arith.constant 4.46428585 : f32
    %13 = vector.broadcast %cst_11 : f32 to vector<1x256xf32>
    %14 = arith.mulf %12, %13 : vector<1x256xf32>
    %c0_12 = arith.constant 0 : index
    %c1_13 = arith.constant 1 : index
    %c0_14 = arith.constant 0 : index
    %c0_15 = arith.constant 0 : index
    %15 = vector.load %arg3[%c0_12, %c1_13, %c0_14, %c0_15] : memref<1x3x1x256xf32, #tpu.memory_space<vmem>>, vector<1x1x1x256xf32>
    %16 = vector.shape_cast %15 : vector<1x1x1x256xf32> to vector<1x256xf32>
    %17 = vector.shape_cast %14 : vector<1x256xf32> to vector<1x1x1x256xf32>
    tpu.vector_store %arg3[%c0_12, %c1_13, %c0_14, %c0_15], %17 {strides = array<i32>} : memref<1x3x1x256xf32, #tpu.memory_space<vmem>>, vector<1x1x1x256xf32>,
    %c0_16 = arith.constant 0 : index
    %c0_17 = arith.constant 0 : index
    %c0_18 = arith.constant 0 : index
    %c0_19 = arith.constant 0 : index
    %18 = vector.load %arg2[%c0_16, %c0_17, %c0_18, %c0_19] : memref<1x3x1x256xf32, #tpu.memory_space<vmem>>, vector<1x1x1x256xf32>
    %19 = vector.shape_cast %18 : vector<1x1x1x256xf32> to vector<1x256xf32>
    %cst_20 = arith.constant 4.060000e-01 : f32
    %20 = vector.broadcast %cst_20 : f32 to vector<1x256xf32>
    %21 = arith.subf %19, %20 : vector<1x256xf32>
    %cst_21 = arith.constant 4.44444466 : f32
    %22 = vector.broadcast %cst_21 : f32 to vector<1x256xf32>
    %23 = arith.mulf %21, %22 : vector<1x256xf32>
    %c0_22 = arith.constant 0 : index
    %c2_23 = arith.constant 2 : index
    %c0_24 = arith.constant 0 : index
    %c0_25 = arith.constant 0 : index
    %24 = vector.load %arg3[%c0_22, %c2_23, %c0_24, %c0_25] : memref<1x3x1x256xf32, #tpu.memory_space<vmem>>, vector<1x1x1x256xf32>
    %25 = vector.shape_cast %24 : vector<1x1x1x256xf32> to vector<1x256xf32>
    %26 = vector.shape_cast %23 : vector<1x256xf32> to vector<1x1x1x256xf32>
    tpu.vector_store %arg3[%c0_22, %c2_23, %c0_24, %c0_25], %26 {strides = array<i32>} : memref<1x3x1x256xf32, #tpu.memory_space<vmem>>, vector<1x1x1x256xf32>,
    return
  }
  func.func @transform_0(%arg0: i32, %arg1: i32) -> (i32, i32, i32, i32) {
    %c0_i32 = arith.constant 0 : i32
    %c0_i32_0 = arith.constant 0 : i32
    %c0_i32_1 = arith.constant 0 : i32
    return %arg0, %c0_i32, %arg1, %c0_i32_0 : i32, i32, i32, i32
  }
  func.func @transform_1(%arg0: i32, %arg1: i32) -> (i32, i32, i32, i32) {
    %c0_i32 = arith.constant 0 : i32
    %c0_i32_0 = arith.constant 0 : i32
    %c0_i32_1 = arith.constant 0 : i32
    return %arg0, %c0_i32, %arg1, %c0_i32_0 : i32, i32, i32, i32
  }
}

</mosaic_0001>

<llo_original>
// kernel: tpu_custom_call.1
$region0: #{tpu_custom_call.1}
  #allocation0 [shape = 'u32[]', space=smem, size = 0x4, offset = 0x4, fixed_abs, tag = 'smem constant byte address 0x4 - core index']
  #allocation1 [shape = 'u32[144,128]{1,0:T(1,128)}', space=vmem, size = 0x12000, scoped, tag = 'internal scratch']
  %s0 = inlined_call_operand.hbm [shape: f32[2,3,1,256], index: 0, kind: input, shape index: {}]
  %s1 = inlined_call_operand.hbm [shape: f32[2,3,1,256], index: 1, kind: output, shape index: {}]
  %s2 = sld [smem:[#allocation0]]
  $region41: #{tpu_custom_call.1} parent=0
    _
  %s4 = ssub.s32 1, %s2
  %s5 = scalar_select 0, %s4, %s2
  $region1: #{tpu_custom_call.1} parent=0
    #allocation2 [shape = 'u8[6144]{0}', space=vmem, size = 0x1800, scoped, tag = 'input window, operand 0']
    #allocation3 [shape = 's32[2]{0}', space=sflag, size = 0x8, scoped, tag = 'scoped memory for tpu_custom_call.1']
    #allocation4 [shape = 's32[2]{0}', space=sflag, size = 0x8, scoped, tag = 'scoped memory for tpu_custom_call.1']
    #allocation5 [shape = 'u8[6144]{0}', space=vmem, size = 0x1800, scoped, tag = 'output window, operand 0']
    %6 = vsyncpa [#allocation3], 0
    %s7 = scalar_lea.sflag [#allocation3], 1
    %8 = vsyncpa %s7, 0
    %9 = vsyncpa [#allocation4], 0
    %s10 = scalar_lea.sflag [#allocation4], 1
    %11 = vsyncpa %s10, 0
    loop: start=0, step=1, limit=4
    $region2: #{tpu_custom_call.1} parent=1 // loop_pre_header
      _
    $region3: #{tpu_custom_call.1} parent=1 // loop_header
      %s13 = sphi 0, %s17
      %p14 = scmp.ge.s32.totalorder %s13, 4
      %s20 = sphi 0, %s32
      %s21 = sphi 0, %s28
      %s22 = sphi 0, %s20
      %s23 = sphi 0, %s21
      %s24 = sphi 0, %s22
      %s25 = sphi 0, %s23
      %s37 = sphi 0, %s39
      %s40 = sphi 0, %s37
      %s41 = sphi 0, %s40
      %s57 = sphi 0, %s41
      %s65 = sphi 0, %s67
      %s68 = sphi 0, %s65
      %s69 = sphi 0, %s68
      %s85 = sphi 0, %s69
    $region4: #{tpu_custom_call.1} parent=1 // loop_header_branch
      %16 = sbr.rel (%p14) target = $region8
    $region5: #{tpu_custom_call.1} parent=1 // loop_body
      %s18 = ssub.s32 %s13, 1
      %s19 = ssub.s32 %s13, 2
      %s26 = sadd.s32 1, %s21
      %p27 = scmp.ge.s32.totalorder %s26, 1
      %s28 = scalar_select %p27, 0, %s26
      %s29 = sadd.s32 1, %s20
      %s30 = scalar_select %p27, %s29, %s20
      %p31 = scmp.ge.s32.totalorder %s30, 2
      %s32 = scalar_select %p31, 0, %s30
      %s33 = ssub.s32 %s20, %s32
      %s34 = ssub.s32 %s21, %s28
      %s35 = sor.u32 %s33, %s34
      %p36 = scmp.eq.s32.totalorder %s35, 0
      %s38 = sadd.s32 %s37, 1
      %s39 = scalar_select %p36, %s37, %s38
      %p42 = pneg %p36
      %p43 = scmp.eq.s32.totalorder %s13, 1
      %p44 = por %p42, %p43
      %p45 = scmp.ne.s32.totalorder %s37, %s40
      %p46 = scmp.eq.s32.totalorder %s13, 0
      %p47 = por %p45, %p46
      %p48 = scmp.ne.s32.totalorder %s37, %s40
      %p49 = scmp.eq.s32.totalorder %s18, 1
      %p50 = por %p48, %p49
      %p51 = scmp.ne.s32.totalorder %s40, %s41
      %p52 = scmp.eq.s32.totalorder %s18, 0
      %p53 = por %p51, %p52
      %p54 = scmp.ne.s32.totalorder %s40, %s41
      %p55 = scmp.eq.s32.totalorder %s19, 1
      %p56 = por %p54, %p55
      %p58 = scmp.ne.s32.totalorder %s41, %s57
      %p59 = scmp.eq.s32.totalorder %s19, 0
      %p60 = por %p58, %p59
      %s61 = ssub.s32 %s20, %s32
      %s62 = ssub.s32 %s21, %s28
      %s63 = sor.u32 %s61, %s62
      %p64 = scmp.eq.s32.totalorder %s63, 0
      %s66 = sadd.s32 %s65, 1
      %s67 = scalar_select %p64, %s65, %s66
      %p70 = pneg %p64
      %p71 = scmp.eq.s32.totalorder %s13, 1
      %p72 = por %p70, %p71
      %p73 = scmp.ne.s32.totalorder %s65, %s68
      %p74 = scmp.eq.s32.totalorder %s13, 0
      %p75 = por %p73, %p74
      %p76 = scmp.ne.s32.totalorder %s65, %s68
      %p77 = scmp.eq.s32.totalorder %s18, 1
      %p78 = por %p76, %p77
      %p79 = scmp.ne.s32.totalorder %s68, %s69
      %p80 = scmp.eq.s32.totalorder %s18, 0
      %p81 = por %p79, %p80
      %p82 = scmp.ne.s32.totalorder %s68, %s69
      %p83 = scmp.eq.s32.totalorder %s19, 1
      %p84 = por %p82, %p83
      %p86 = scmp.ne.s32.totalorder %s69, %s85
      %p87 = scmp.eq.s32.totalorder %s19, 0
      %p88 = por %p86, %p87
      %p89 = scmp.le.s32.totalorder 1, %s13
      %p90 = scmp.lt.s32.totalorder %s13, 3
      %p91 = pnand %p89, %p90
      %p92 = pneg %p91
      // Predicated region
      $region9: #{tpu_custom_call.1} parent=5 // pred_check
        _
      $region10: #{tpu_custom_call.1} parent=5 // pred_check_branch
        %94 = sbr.rel (%p91) target = $region12
      $region11: #{tpu_custom_call.1} parent=5 // pred_region
        %s95 = ssub.s32 %s13, 1
      $region12: #{tpu_custom_call.1} parent=5 // pred_fallthru
        _
      %p96 = scmp.lt.s32.totalorder %s13, 2
      // Predicated region
      $region13: #{tpu_custom_call.1} parent=5 // pred_check
        %p97 = pneg %p96
      $region14: #{tpu_custom_call.1} parent=5 // pred_check_branch
        %99 = sbr.rel (%p97) target = $region16
      $region15: #{tpu_custom_call.1} parent=5 // pred_region
        // Predicated region
        $region17: #{tpu_custom_call.1} parent=15 // pred_check
          %p100 = pneg %p47
        $region18: #{tpu_custom_call.1} parent=15 // pred_check_branch
          %102 = sbr.rel (%p100) target = $region20
        $region19: #{tpu_custom_call.1} parent=15 // pred_region
          %s103 = sand.u32 %s37, 1
          %s104 = scalar_lea.sflag [#allocation3], %s103
          %s105 = sand.u32 %s37, 1
          %s106 = smul.addr %s105, 6
          %s107 = scalar_lea.vmem [#allocation2], %s106
          %s109 = ssub.s32 96, 96
          %110 = vsyncadd %s104, %s109
          %s111 = smul.addr %s21, 2
          %s112 = smul.addr %s20, 6
          %s113 = sadd.s32 %s111, %s112
          %s114 = smul.addr %s113, 16
          %s115 = scalar_lea.hbm %s0, %s114
          %s116 = sshll.u32 %s107, 4
          %s117 = int_to_ptr.vmem [resolvable:$true] %s116
          %122 = dma.hbm_to_vmem [thread:$0]  %s115, 96, %s117, %s104, 32, 32, 2
        $region20: #{tpu_custom_call.1} parent=15 // pred_fallthru
          _
      $region16: #{tpu_custom_call.1} parent=5 // pred_fallthru
        _
      %p123 = scmp.le.s32.totalorder 1, %s13
      %p124 = scmp.lt.s32.totalorder %s13, 3
      %p125 = pnand %p123, %p124
      %p126 = pneg %p125
      // Predicated region
      $region21: #{tpu_custom_call.1} parent=5 // pred_check
        _
      $region22: #{tpu_custom_call.1} parent=5 // pred_check_branch
        %128 = sbr.rel (%p125) target = $region24
      $region23: #{tpu_custom_call.1} parent=5 // pred_region
        %s129 = ssub.s32 %s13, 1
        %s130 = sand.u32 %s40, 1
        %s131 = scalar_lea.sflag [#allocation3], %s130
        %s132 = sand.u32 %s40, 1
        %s133 = smul.addr %s132, 6
        %s134 = scalar_lea.vmem [#allocation2], %s133
        // Predicated region
        $region25: #{tpu_custom_call.1} parent=23 // pred_check
          %p135 = pneg %p53
        $region26: #{tpu_custom_call.1} parent=23 // pred_check_branch
          %137 = sbr.rel (%p135) target = $region28
        $region27: #{tpu_custom_call.1} parent=23 // pred_region
          %138 = dma.done %s131, 96
        $region28: #{tpu_custom_call.1} parent=23 // pred_fallthru
          _
        %s139 = sand.u32 %s40, 1
        %s140 = scalar_lea.sflag [#allocation3], %s139
        %s141 = sand.u32 %s40, 1
        %s142 = smul.addr %s141, 6
        %s143 = scalar_lea.vmem [#allocation2], %s142
        %p144 = pneg %p53
        %p145 = pneg %p50
        %p146 = pneg %p81
        %p147 = pneg %p78
        %s148 = sand.u32 %s68, 1
        %s149 = scalar_lea.sflag [#allocation4], %s148
        %s150 = sand.u32 %s68, 1
        %s151 = smul.addr %s150, 6
        %s152 = scalar_lea.vmem [#allocation5], %s151
        %s153 = scalar_lea.vmem %s134, 4 [#allocation2]
        %v154 = vld [vmem:[%s153] sm:$0x3]
        %v155 = vsub.f32 %v154, 0.485
        %v156 = vmul.f32 %v155, 4.366812
        %v157 = vlaneseq
        %vm158 = vcmp.ge.s32.totalorder %v157, 0
        %vm159 = vcmp.lt.s32.totalorder %v157, 256
        %vm160 = vmand %vm158, %vm159
        %161 = vst.msk [vmem:[%s152] sm:$0x3] %vm160, %v156
        %s162 = scalar_lea.vmem %s134, 2 [#allocation2]
        %v163 = vld [vmem:[%s162] sm:$0x3]
        %v164 = vsub.f32 %v163, 0.456
        %v165 = vmul.f32 %v164, 4.464286
        %s166 = scalar_lea.vmem %s152, 2 [#allocation5]
        %167 = vst.msk [vmem:[%s166] sm:$0x3] %vm160, %v165
        %v168 = vld [vmem:[%s134] sm:$0x3]
        %v169 = vsub.f32 %v168, 0.406
        %v170 = vmul.f32 %v169, 4.4444447
        %s171 = scalar_lea.vmem %s152, 4 [#allocation5]
        %172 = vst.msk [vmem:[%s171] sm:$0x3] %vm160, %v170
        %s173 = sand.u32 %s68, 1
        %s174 = scalar_lea.sflag [#allocation4], %s173
        %s175 = sand.u32 %s68, 1
        %s176 = smul.addr %s175, 6
        %s177 = scalar_lea.vmem [#allocation5], %s176
        // Predicated region
        $region29: #{tpu_custom_call.1} parent=23 // pred_check
          %p178 = pneg %p78
        $region30: #{tpu_custom_call.1} parent=23 // pred_check_branch
          %180 = sbr.rel (%p178) target = $region32
        $region31: #{tpu_custom_call.1} parent=23 // pred_region
          %s182 = ssub.s32 96, 96
          %183 = vsyncadd %s174, %s182
          %s184 = smul.addr %s23, 2
          %s185 = smul.addr %s22, 6
          %s186 = sadd.s32 %s184, %s185
          %s187 = smul.addr %s186, 16
          %s188 = scalar_lea.hbm %s1, %s187
          %s189 = sshll.u32 %s177, 4
          %s190 = int_to_ptr.vmem [resolvable:$true] %s189
          %195 = dma.vmem_to_hbm [thread:$0]  %s190, 96, %s188, %s174, 32, 32, 2
        $region32: #{tpu_custom_call.1} parent=23 // pred_fallthru
          _
      $region24: #{tpu_custom_call.1} parent=5 // pred_fallthru
        _
      %p196 = scmp.le.s32.totalorder 2, %s13
      // Predicated region
      $region33: #{tpu_custom_call.1} parent=5 // pred_check
        %p197 = pneg %p196
      $region34: #{tpu_custom_call.1} parent=5 // pred_check_branch
        %199 = sbr.rel (%p197) target = $region36
      $region35: #{tpu_custom_call.1} parent=5 // pred_region
        %s200 = ssub.s32 %s13, 2
        // Predicated region
        $region37: #{tpu_custom_call.1} parent=35 // pred_check
          %p201 = pneg %p84
        $region38: #{tpu_custom_call.1} parent=35 // pred_check_branch
          %203 = sbr.rel (%p201) target = $region40
        $region39: #{tpu_custom_call.1} parent=35 // pred_region
          %s204 = sand.u32 %s69, 1
          %s205 = scalar_lea.sflag [#allocation4], %s204
          %s206 = sand.u32 %s69, 1
          %s207 = smul.addr %s206, 6
          %s208 = scalar_lea.vmem [#allocation5], %s207
          %209 = dma.done %s205, 96
        $region40: #{tpu_custom_call.1} parent=35 // pred_fallthru
          _
      $region36: #{tpu_custom_call.1} parent=5 // pred_fallthru
        _
    $region6: #{tpu_custom_call.1} parent=1 // loop_footer
      %s17 = sadd.s32 1, %s13
    $region7: #{tpu_custom_call.1} parent=1 // loop_footer_branch
      %12 = sbr.rel target = $region3
    $region8: #{tpu_custom_call.1} parent=1 // loop_exit
      _
    %210 = vsyncpa [#allocation3], 1
    %s211 = scalar_lea.sflag [#allocation3], 1
    %212 = vsyncpa %s211, 1
    %213 = vsyncpa [#allocation4], 1
    %s214 = scalar_lea.sflag [#allocation4], 1
    %215 = vsyncpa %s214, 1

</llo_original>
